<compile_context>
chip_gen: v5e
topology: v5e:2x2
jax: 0.10.0
libtpu: 0.0.40
codegen_flags: <defaults>
</compile_context>

<pallas_src>
import functools

import jax
import jax.numpy as jnp
from jax.experimental import pallas as pl
from jax.experimental.pallas import tpu as pltpu

_LANES = 128
_BOXES_PER_ROW = _LANES // 4        # 32 interleaved [cx cy w h] boxes per row
_MAX_ROW_TILE = 4096                # 4096 x 128 x 4 B = 2 MiB per input block
_MIN_GRID_STEPS = 4                 # keep the "parallel" axis shardable on v7x


def _iou_loss_kernel(pred_ref, tgt_ref, out_ref, *, loss_type, fuse_reduction,
                     n_boxes, row_tile):
    """One grid step over a (row_tile, 128) tile of interleaved boxes.

    Lane l of a row holds component l % 4 (cx, cy, w, h) of box l // 4.  All
    cross-component combinations live inside one 4-lane group, so they are
    expressed as static lane-offset slices (intra-vreg rotates on the XLU).
    """
    p = pred_ref[...]                       # (R, 128) f32, interleaved
    t = tgt_ref[...]

    # "Center-lane" views, width 126: element j <-> absolute lane j.
    # pc/tc: center coordinate at class-0 (x) / class-1 (y) lanes.
    # ps/ts: the matching size (w for the x lane, h for the y lane), lane j+2.
    pc, ps = p[:, 0:126], p[:, 2:128]
    tc, ts = t[:, 0:126], t[:, 2:128]

    half_ps = ps * 0.5
    tl_p = pc - half_ps
    br_p = pc + half_ps

    # torch: target[:, :2] - (target[:, 2:] * 0.5).long()  (truncation to int)
    off_t = jnp.trunc(ts * 0.5)
    tl_t = tc - off_t
    br_t = tl_t + ts

    tl = jnp.maximum(tl_p, tl_t)
    br = jnp.minimum(br_p, br_t)
    d = br - tl                             # x-extent at class-0, y at class-1

    # Per-box (class-0 lane) quantities, width 125 (lanes 0..124 = boxes 0..31).
    dx, dy = d[:, 0:125], d[:, 1:126]
    en = jnp.logical_and(dx > 0.0, dy > 0.0)
    area_i = jnp.where(en, dx * dy, 0.0)

    pw, ph = p[:, 2:127], p[:, 3:128]
    tw, th = t[:, 2:127], t[:, 3:128]
    area_p = pw * ph
    area_g = tw * th

    area_u = area_p + area_g - area_i
    # EUP reciprocal + VPU multiply instead of a divide.
    iou = area_i * pl.reciprocal(area_u + 1e-16, approx=False)

    if loss_type == 'iou':
        loss = 1.0 - iou * iou
    elif loss_type == 'giou':
        half_ts = ts * 0.5                  # NOTE: giou path does NOT truncate (torch parity)
        c_tl = jnp.minimum(tl_p, tc - half_ts)
        c_br = jnp.maximum(br_p, tc + half_ts)
        cd = c_br - c_tl
        area_c = cd[:, 0:125] * cd[:, 1:126]
        giou = iou - (area_c - area_u) * pl.reciprocal(
            jnp.maximum(area_c, 1e-16), approx=False)
        loss = 1.0 - jnp.clip(giou, -1.0, 1.0)
    else:
        raise ValueError(f"unknown loss_type: {loss_type}")

    if fuse_reduction:
        # Masked partial sum for 'mean'/'sum': keep only class-0 lanes of valid
        # (un-padded, in-bounds) boxes.  where() also squashes any garbage from
        # the un-DMA'd tail of the last grid step.
        row0 = pl.program_id(0) * row_tile
        r_ids = jax.lax.broadcasted_iota(jnp.int32, loss.shape, 0) + row0
        l_ids = jax.lax.broadcasted_iota(jnp.int32, loss.shape, 1)
        flat = r_ids * _LANES + l_ids       # == 4 * box index at class-0 lanes
        mask = jnp.logical_and(flat < 4 * n_boxes, (l_ids & 3) == 0)
        masked = jnp.where(mask, loss, 0.0)
        out_ref[...] = jnp.zeros_like(out_ref)            # (1, 128)
        out_ref[:, 0:125] = jnp.sum(masked, axis=0, keepdims=True)
    else:
        # Loss stays interleaved (valid at lane class 0); lanes 125..127 of the
        # output block are never produced and are discarded by the wrapper.
        out_ref[:, 0:125] = loss


def _elementwise_loss_jnp(pred, target, loss_type):
    """Fused XLA elementwise path (tiny N) and the correctness reference."""
    tl_p = pred[:, :2] - pred[:, 2:] * 0.5
    br_p = pred[:, :2] + pred[:, 2:] * 0.5
    tl_t = target[:, :2] - jnp.trunc(target[:, 2:] * 0.5)
    br_t = tl_t + target[:, 2:]
    tl = jnp.maximum(tl_p, tl_t)
    br = jnp.minimum(br_p, br_t)
    area_p = jnp.prod(pred[:, 2:], 1)
    area_g = jnp.prod(target[:, 2:], 1)
    en = jnp.prod((tl < br).astype(jnp.float32), axis=1)
    area_i = jnp.prod(br - tl, 1) * en
    area_u = area_p + area_g - area_i
    iou = area_i / (area_u + 1e-16)
    if loss_type == 'iou':
        loss = 1.0 - iou ** 2
    elif loss_type == 'giou':
        c_tl = jnp.minimum(pred[:, :2] - pred[:, 2:] * 0.5,
                           target[:, :2] - target[:, 2:] * 0.5)
        c_br = jnp.maximum(pred[:, :2] + pred[:, 2:] * 0.5,
                           target[:, :2] + target[:, 2:] * 0.5)
        area_c = jnp.prod(c_br - c_tl, 1)
        giou = iou - (area_c - area_u) / jnp.maximum(area_c, 1e-16)
        loss = 1.0 - jnp.clip(giou, -1.0, 1.0)
    else:
        raise ValueError(f"unknown loss_type: {loss_type}")
    return loss


def iou_loss(pred, target, *, reduction='none', loss_type='iou',
             min_pallas_boxes=1024):
    """JAX/Pallas equivalent of IOUloss.forward."""
    if loss_type not in ('iou', 'giou'):
        raise ValueError(f"unknown loss_type: {loss_type}")
    pred = jnp.asarray(pred, jnp.float32).reshape(-1, 4)
    target = jnp.asarray(target, jnp.float32).reshape(-1, 4)
    assert pred.shape[0] == target.shape[0]
    n = pred.shape[0]

    min_boxes = max(min_pallas_boxes, 8 * _BOXES_PER_ROW)   # need >= 8 rows
    if n < min_boxes:
        # Tiny N: pallas_call fixed cost would dominate; use fused XLA.
        loss = _elementwise_loss_jnp(pred, target, loss_type)
        if reduction == 'mean':
            return loss.mean()
        if reduction == 'sum':
            return loss.sum()
        return loss

    # Zero-copy interleaved view: (n, 4) -> (rows, 128).  Only when n is not a
    # multiple of 32 do we pay one pad copy (XLA buffers are dense; unavoidable).
    n_pad = pl.cdiv(n, _BOXES_PER_ROW) * _BOXES_PER_ROW
    rows = n_pad // _BOXES_PER_ROW

    def to_rows(x):
        if n_pad != n:
            x = jnp.pad(x, ((0, n_pad - n), (0, 0)))
        return x.reshape(rows, _LANES)

    # Tile size: as large as comfortably fits default scoped VMEM on all gens
    # (2 MiB/input/step, double-buffered), capped so the grid keeps >= 4 steps
    # (v7x megacore).  Multiple of 8 sublanes, never exceeding the array.
    row_tile = min(_MAX_ROW_TILE, pl.cdiv(rows, _MIN_GRID_STEPS))
    row_tile = max(8, (row_tile // 8) * 8)
    row_tile = min(row_tile, (rows // 8) * 8)
    num_steps = pl.cdiv(rows, row_tile)

    fuse_reduction = reduction in ('mean', 'sum')
    kernel = functools.partial(_iou_loss_kernel, loss_type=loss_type,
                               fuse_reduction=fuse_reduction, n_boxes=n,
                               row_tile=row_tile)
    if fuse_reduction:
        out_shape = jax.ShapeDtypeStruct((num_steps, _LANES), jnp.float32)
        out_spec = pl.BlockSpec((1, _LANES), lambda i: (i, 0))
    else:
        out_shape = jax.ShapeDtypeStruct((rows, _LANES), jnp.float32)
        out_spec = pl.BlockSpec((row_tile, _LANES), lambda i: (i, 0))

    out = pl.pallas_call(
        kernel,
        out_shape=out_shape,
        grid=(num_steps,),
        in_specs=[pl.BlockSpec((row_tile, _LANES), lambda i: (i, 0)),
                  pl.BlockSpec((row_tile, _LANES), lambda i: (i, 0))],
        out_specs=out_spec,
        compiler_params=pltpu.CompilerParams(
            dimension_semantics=("parallel",)),
    )(to_rows(pred), to_rows(target))

    if fuse_reduction:
        total = jnp.sum(out)
        return total / n if reduction == 'mean' else total

    # Per-box loss lives at lane class 0 of the interleaved layout; compact it
    # with a cheap XLA strided slice and drop padded boxes.
    return out.reshape(-1)[0:4 * n:4]


def _iou_loss_ref(pred, target, reduction='none', loss_type='iou'):
    """Pure-jnp reference mirroring the torch module (for verification)."""
    pred = jnp.asarray(pred, jnp.float32).reshape(-1, 4)
    target = jnp.asarray(target, jnp.float32).reshape(-1, 4)
    loss = _elementwise_loss_jnp(pred, target, loss_type)
    if reduction == 'mean':
        return loss.mean()
    if reduction == 'sum':
        return loss.sum()
    return loss


if __name__ == "__main__":
    key = jax.random.PRNGKey(0)
    k1, k2, k3, k4 = jax.random.split(key, 4)

    def make_boxes(kc, ks, n):
        centers = jax.random.uniform(kc, (n, 2), minval=0.0, maxval=64.0)
        sizes = jax.random.uniform(ks, (n, 2), minval=1.0, maxval=16.0)
        return jnp.concatenate([centers, sizes], axis=1)

    N = 4096                                 # multiple of 32 -> zero-copy view
    pred = make_boxes(k1, k2, N)
    target = make_boxes(k3, k4, N)

    ok = True

    # Pallas path, both loss types, reduction='none'.
    for lt in ('iou', 'giou'):
        out = iou_loss(pred, target, reduction='none', loss_type=lt)
        jax.block_until_ready(out)
        ref = _iou_loss_ref(pred, target, 'none', lt)
        ok &= out.shape == (N,)
        ok &= bool(jnp.allclose(out, ref, atol=1e-5, rtol=1e-5))

    # Ragged box count (not a multiple of 32) -> exercises the pad path.
    Np = 2000
    out_p = iou_loss(pred[:Np], target[:Np], reduction='none', loss_type='iou')
    jax.block_until_ready(out_p)
    ok &= bool(jnp.allclose(out_p, _iou_loss_ref(pred[:Np], target[:Np]),
                            atol=1e-5, rtol=1e-5))

    # Fused in-kernel reductions.
    for red in ('mean', 'sum'):
        out_r = iou_loss(pred, target, reduction=red, loss_type='iou')
        jax.block_until_ready(out_r)
        ref_r = _iou_loss_ref(pred, target, red, 'iou')
        ok &= bool(jnp.allclose(out_r, ref_r, atol=1e-4, rtol=1e-4))

    # Tiny-N fused-XLA fallback.
    out_s = iou_loss(pred[:16], target[:16], loss_type='iou')
    jax.block_until_ready(out_s)
    ok &= bool(jnp.allclose(out_s, _iou_loss_ref(pred[:16], target[:16]),
                            atol=1e-5, rtol=1e-5))

    print("KERNEL_OK" if ok else "KERNEL_FAILED")
</pallas_src>

<mosaic_0001>
module attributes {stable_mosaic.version = 11 : i64} {
  func.func @_iou_loss_kernel(%arg0: i32, %arg1: memref<32x128xf32, #tpu.memory_space<vmem>>, %arg2: memref<32x128xf32, #tpu.memory_space<vmem>>, %arg3: memref<32x128xf32, #tpu.memory_space<vmem>>) attributes {dimension_semantics = [#tpu.dimension_semantics<parallel>], iteration_bounds = array<i64: 4>, scalar_prefetch = 0 : i64, scratch_operands = 0 : i64, tpu.core_type = #tpu.core_type<tc>, window_params = [{transform_indices = @transform_0, window_bounds = array<i64: 32, 128>}, {transform_indices = @transform_1, window_bounds = array<i64: 32, 128>}, {transform_indices = @transform_2, window_bounds = array<i64: 32, 128>}]} {
    %c0 = arith.constant 0 : index
    %c0_0 = arith.constant 0 : index
    %0 = vector.load %arg1[%c0, %c0_0] : memref<32x128xf32, #tpu.memory_space<vmem>>, vector<32x128xf32>
    %c0_1 = arith.constant 0 : index
    %c0_2 = arith.constant 0 : index
    %1 = vector.load %arg2[%c0_1, %c0_2] : memref<32x128xf32, #tpu.memory_space<vmem>>, vector<32x128xf32>
    %2 = vector.extract_strided_slice %0 {offsets = [0, 0], sizes = [32, 126], strides = [1, 1]} : vector<32x128xf32> to vector<32x126xf32>
    %3 = vector.extract_strided_slice %0 {offsets = [0, 2], sizes = [32, 126], strides = [1, 1]} : vector<32x128xf32> to vector<32x126xf32>
    %4 = vector.extract_strided_slice %1 {offsets = [0, 0], sizes = [32, 126], strides = [1, 1]} : vector<32x128xf32> to vector<32x126xf32>
    %5 = vector.extract_strided_slice %1 {offsets = [0, 2], sizes = [32, 126], strides = [1, 1]} : vector<32x128xf32> to vector<32x126xf32>
    %cst = arith.constant 5.000000e-01 : f32
    %6 = vector.broadcast %cst : f32 to vector<32x126xf32>
    %7 = arith.mulf %3, %6 : vector<32x126xf32>
    %8 = arith.subf %2, %7 : vector<32x126xf32>
    %9 = arith.addf %2, %7 : vector<32x126xf32>
    %cst_3 = arith.constant 5.000000e-01 : f32
    %10 = vector.broadcast %cst_3 : f32 to vector<32x126xf32>
    %11 = arith.mulf %5, %10 : vector<32x126xf32>
    %cst_4 = arith.constant 0.000000e+00 : f32
    %12 = vector.broadcast %cst_4 : f32 to vector<32x126xf32>
    %13 = arith.cmpf olt, %11, %12 : vector<32x126xf32>
    %14 = math.ceil %11 : vector<32x126xf32>
    %15 = math.floor %11 : vector<32x126xf32>
    %16 = arith.select %13, %14, %15 : vector<32x126xi1>, vector<32x126xf32>
    %17 = arith.subf %4, %16 : vector<32x126xf32>
    %18 = arith.addf %17, %5 : vector<32x126xf32>
    %19 = arith.maximumf %8, %17 : vector<32x126xf32>
    %20 = arith.minimumf %9, %18 : vector<32x126xf32>
    %21 = arith.subf %20, %19 : vector<32x126xf32>
    %22 = vector.extract_strided_slice %21 {offsets = [0, 0], sizes = [32, 125], strides = [1, 1]} : vector<32x126xf32> to vector<32x125xf32>
    %23 = vector.extract_strided_slice %21 {offsets = [0, 1], sizes = [32, 125], strides = [1, 1]} : vector<32x126xf32> to vector<32x125xf32>
    %cst_5 = arith.constant 0.000000e+00 : f32
    %24 = vector.broadcast %cst_5 : f32 to vector<32x125xf32>
    %25 = arith.cmpf ogt, %22, %24 : vector<32x125xf32>
    %cst_6 = arith.constant 0.000000e+00 : f32
    %26 = vector.broadcast %cst_6 : f32 to vector<32x125xf32>
    %27 = arith.cmpf ogt, %23, %26 : vector<32x125xf32>
    %28 = arith.andi %25, %27 : vector<32x125xi1>
    %29 = arith.mulf %22, %23 : vector<32x125xf32>
    %cst_7 = arith.constant 0.000000e+00 : f32
    %30 = vector.broadcast %cst_7 : f32 to vector<32x125xf32>
    %31 = arith.select %28, %29, %30 : vector<32x125xi1>, vector<32x125xf32>
    %32 = vector.extract_strided_slice %0 {offsets = [0, 2], sizes = [32, 125], strides = [1, 1]} : vector<32x128xf32> to vector<32x125xf32>
    %33 = vector.extract_strided_slice %0 {offsets = [0, 3], sizes = [32, 125], strides = [1, 1]} : vector<32x128xf32> to vector<32x125xf32>
    %34 = vector.extract_strided_slice %1 {offsets = [0, 2], sizes = [32, 125], strides = [1, 1]} : vector<32x128xf32> to vector<32x125xf32>
    %35 = vector.extract_strided_slice %1 {offsets = [0, 3], sizes = [32, 125], strides = [1, 1]} : vector<32x128xf32> to vector<32x125xf32>
    %36 = arith.mulf %32, %33 : vector<32x125xf32>
    %37 = arith.mulf %34, %35 : vector<32x125xf32>
    %38 = arith.addf %36, %37 : vector<32x125xf32>
    %39 = arith.subf %38, %31 : vector<32x125xf32>
    %cst_8 = arith.constant 1.000000e-16 : f32
    %40 = vector.broadcast %cst_8 : f32 to vector<32x125xf32>
    %41 = arith.addf %39, %40 : vector<32x125xf32>
    %42 = tpu.reciprocal %41 : vector<32x125xf32> -> vector<32x125xf32>
    %43 = arith.mulf %31, %42 : vector<32x125xf32>
    %44 = arith.mulf %43, %43 : vector<32x125xf32>
    %cst_9 = arith.constant 1.000000e+00 : f32
    %45 = vector.broadcast %cst_9 : f32 to vector<32x125xf32>
    %46 = arith.subf %45, %44 : vector<32x125xf32>
    %c0_10 = arith.constant 0 : index
    %c0_11 = arith.constant 0 : index
    %47 = vector.load %arg3[%c0_10, %c0_11] : memref<32x128xf32, #tpu.memory_space<vmem>>, vector<32x125xf32>
    tpu.vector_store %arg3[%c0_10, %c0_11], %46 {strides = array<i32>} : memref<32x128xf32, #tpu.memory_space<vmem>>, vector<32x125xf32>,
    return
  }
  func.func @transform_0(%arg0: i32) -> (i32, i32) {
    %c0_i32 = arith.constant 0 : i32
    %c0_i32_0 = arith.constant 0 : i32
    return %arg0, %c0_i32 : i32, i32
  }
  func.func @transform_1(%arg0: i32) -> (i32, i32) {
    %c0_i32 = arith.constant 0 : i32
    %c0_i32_0 = arith.constant 0 : i32
    return %arg0, %c0_i32 : i32, i32
  }
  func.func @transform_2(%arg0: i32) -> (i32, i32) {
    %c0_i32 = arith.constant 0 : i32
    %c0_i32_0 = arith.constant 0 : i32
    return %arg0, %c0_i32 : i32, i32
  }
}

</mosaic_0001>

<llo_original>
// kernel: tpu_custom_call.1
$region0: #{tpu_custom_call.1}
  #allocation0 [shape = 'u32[]', space=smem, size = 0x4, offset = 0x4, fixed_abs, tag = 'smem constant byte address 0x4 - core index']
  #allocation1 [shape = 'u32[72,128]{1,0:T(1,128)}', space=vmem, size = 0x9000, scoped, tag = 'internal scratch']
  %s0 = inlined_call_operand.hbm [shape: f32[128,128], index: 0, kind: input, shape index: {}]
  %s1 = inlined_call_operand.hbm [shape: f32[128,128], index: 1, kind: input, shape index: {}]
  %s2 = inlined_call_operand.hbm [shape: f32[128,128], index: 2, kind: output, shape index: {}]
  %s3 = sld [smem:[#allocation0]]
  $region49: #{tpu_custom_call.1} parent=0
    _
  %s5 = ssub.s32 1, %s3
  %s6 = scalar_select 0, %s5, %s3
  $region1: #{tpu_custom_call.1} parent=0
    #allocation2 [shape = 'u8[32768]{0}', space=vmem, size = 0x8000, scoped, tag = 'input window, operand 0']
    #allocation3 [shape = 's32[2]{0}', space=sflag, size = 0x8, scoped, tag = 'scoped memory for tpu_custom_call.1']
    #allocation4 [shape = 's32[2]{0}', space=sflag, size = 0x8, scoped, tag = 'scoped memory for tpu_custom_call.1']
    #allocation5 [shape = 'u8[32768]{0}', space=vmem, size = 0x8000, scoped, tag = 'input window, operand 1']
    #allocation6 [shape = 's32[2]{0}', space=sflag, size = 0x8, scoped, tag = 'scoped memory for tpu_custom_call.1']
    #allocation7 [shape = 'u8[32768]{0}', space=vmem, size = 0x8000, scoped, tag = 'output window, operand 0']
    %7 = vsyncpa [#allocation3], 0
    %s8 = scalar_lea.sflag [#allocation3], 1
    %9 = vsyncpa %s8, 0
    %10 = vsyncpa [#allocation6], 0
    %s11 = scalar_lea.sflag [#allocation6], 1
    %12 = vsyncpa %s11, 0
    %13 = vsyncpa [#allocation4], 0
    %s14 = scalar_lea.sflag [#allocation4], 1
    %15 = vsyncpa %s14, 0
    loop: start=0, step=1, limit=6
    $region2: #{tpu_custom_call.1} parent=1 // loop_pre_header
      _
    $region3: #{tpu_custom_call.1} parent=1 // loop_header
      %s17 = sphi 0, %s21
      %p18 = scmp.ge.s32.totalorder %s17, 6
      %s27 = sphi 0, %s29
      %s30 = sphi 0, %s27
      %s31 = sphi 0, %s30
      %s47 = sphi 0, %s31
      %s53 = sphi 0, %s55
      %s56 = sphi 0, %s53
      %s57 = sphi 0, %s56
      %s73 = sphi 0, %s57
      %s79 = sphi 0, %s81
      %s82 = sphi 0, %s79
      %s83 = sphi 0, %s82
      %s99 = sphi 0, %s83
    $region4: #{tpu_custom_call.1} parent=1 // loop_header_branch
      %20 = sbr.rel (%p18) target = $region8
    $region5: #{tpu_custom_call.1} parent=1 // loop_body
      %s22 = ssub.s32 %s17, 1
      %s23 = ssub.s32 %s17, 2
      %s24 = sadd.s32 %s17, 1
      %s25 = ssub.s32 %s17, %s24
      %p26 = scmp.eq.s32.totalorder %s25, 0
      %s28 = sadd.s32 %s27, 1
      %s29 = scalar_select %p26, %s27, %s28
      %p32 = pneg %p26
      %p33 = scmp.eq.s32.totalorder %s17, 3
      %p34 = por %p32, %p33
      %p35 = scmp.ne.s32.totalorder %s27, %s30
      %p36 = scmp.eq.s32.totalorder %s17, 0
      %p37 = por %p35, %p36
      %p38 = scmp.ne.s32.totalorder %s27, %s30
      %p39 = scmp.eq.s32.totalorder %s22, 3
      %p40 = por %p38, %p39
      %p41 = scmp.ne.s32.totalorder %s30, %s31
      %p42 = scmp.eq.s32.totalorder %s22, 0
      %p43 = por %p41, %p42
      %p44 = scmp.ne.s32.totalorder %s30, %s31
      %p45 = scmp.eq.s32.totalorder %s23, 3
      %p46 = por %p44, %p45
      %p48 = scmp.ne.s32.totalorder %s31, %s47
      %p49 = scmp.eq.s32.totalorder %s23, 0
      %p50 = por %p48, %p49
      %s51 = ssub.s32 %s17, %s24
      %p52 = scmp.eq.s32.totalorder %s51, 0
      %s54 = sadd.s32 %s53, 1
      %s55 = scalar_select %p52, %s53, %s54
      %p58 = pneg %p52
      %p59 = scmp.eq.s32.totalorder %s17, 3
      %p60 = por %p58, %p59
      %p61 = scmp.ne.s32.totalorder %s53, %s56
      %p62 = scmp.eq.s32.totalorder %s17, 0
      %p63 = por %p61, %p62
      %p64 = scmp.ne.s32.totalorder %s53, %s56
      %p65 = scmp.eq.s32.totalorder %s22, 3
      %p66 = por %p64, %p65
      %p67 = scmp.ne.s32.totalorder %s56, %s57
      %p68 = scmp.eq.s32.totalorder %s22, 0
      %p69 = por %p67, %p68
      %p70 = scmp.ne.s32.totalorder %s56, %s57
      %p71 = scmp.eq.s32.totalorder %s23, 3
      %p72 = por %p70, %p71
      %p74 = scmp.ne.s32.totalorder %s57, %s73
      %p75 = scmp.eq.s32.totalorder %s23, 0
      %p76 = por %p74, %p75
      %s77 = ssub.s32 %s17, %s24
      %p78 = scmp.eq.s32.totalorder %s77, 0
      %s80 = sadd.s32 %s79, 1
      %s81 = scalar_select %p78, %s79, %s80
      %p84 = pneg %p78
      %p85 = scmp.eq.s32.totalorder %s17, 3
      %p86 = por %p84, %p85
      %p87 = scmp.ne.s32.totalorder %s79, %s82
      %p88 = scmp.eq.s32.totalorder %s17, 0
      %p89 = por %p87, %p88
      %p90 = scmp.ne.s32.totalorder %s79, %s82
      %p91 = scmp.eq.s32.totalorder %s22, 3
      %p92 = por %p90, %p91
      %p93 = scmp.ne.s32.totalorder %s82, %s83
      %p94 = scmp.eq.s32.totalorder %s22, 0
      %p95 = por %p93, %p94
      %p96 = scmp.ne.s32.totalorder %s82, %s83
      %p97 = scmp.eq.s32.totalorder %s23, 3
      %p98 = por %p96, %p97
      %p100 = scmp.ne.s32.totalorder %s83, %s99
      %p101 = scmp.eq.s32.totalorder %s23, 0
      %p102 = por %p100, %p101
      %p103 = scmp.le.s32.totalorder 1, %s17
      %p104 = scmp.lt.s32.totalorder %s17, 5
      %p105 = pnand %p103, %p104
      %p106 = pneg %p105
      // Predicated region
      $region9: #{tpu_custom_call.1} parent=5 // pred_check
        _
      $region10: #{tpu_custom_call.1} parent=5 // pred_check_branch
        %108 = sbr.rel (%p105) target = $region12
      $region11: #{tpu_custom_call.1} parent=5 // pred_region
        %s109 = ssub.s32 %s17, 1
      $region12: #{tpu_custom_call.1} parent=5 // pred_fallthru
        _
      %p110 = scmp.lt.s32.totalorder %s17, 4
      // Predicated region
      $region13: #{tpu_custom_call.1} parent=5 // pred_check
        %p111 = pneg %p110
      $region14: #{tpu_custom_call.1} parent=5 // pred_check_branch
        %113 = sbr.rel (%p111) target = $region16
      $region15: #{tpu_custom_call.1} parent=5 // pred_region
        // Predicated region
        $region17: #{tpu_custom_call.1} parent=15 // pred_check
          %p114 = pneg %p37
        $region18: #{tpu_custom_call.1} parent=15 // pred_check_branch
          %116 = sbr.rel (%p114) target = $region20
        $region19: #{tpu_custom_call.1} parent=15 // pred_region
          %s117 = sand.u32 %s27, 1
          %s118 = scalar_lea.sflag [#allocation3], %s117
          %s119 = sand.u32 %s27, 1
          %s120 = smul.addr %s119, 32
          %s121 = scalar_lea.vmem [#allocation2], %s120
          %s122 = smul.u32 4, %s17
          %124 = vsyncadd %s118, 0
          %s125 = smul.addr %s122, 8
          %s126 = scalar_lea.hbm %s0, %s125
          %s127 = sshll.u32 %s126, 4
          %s128 = int_to_ptr.hbm [resolvable:$true] %s127
          %s129 = sshll.u32 %s121, 4
          %s130 = int_to_ptr.vmem [resolvable:$true] %s129
          %135 = dma.hbm_to_vmem [thread:$0]  %s128, 512, %s130, %s118, 128, 128, 8
        $region20: #{tpu_custom_call.1} parent=15 // pred_fallthru
          _
        // Predicated region
        $region21: #{tpu_custom_call.1} parent=15 // pred_check
          %p136 = pneg %p63
        $region22: #{tpu_custom_call.1} parent=15 // pred_check_branch
          %138 = sbr.rel (%p136) target = $region24
        $region23: #{tpu_custom_call.1} parent=15 // pred_region
          %s139 = sand.u32 %s53, 1
          %s140 = scalar_lea.sflag [#allocation6], %s139
          %s141 = sand.u32 %s53, 1
          %s142 = smul.addr %s141, 32
          %s143 = scalar_lea.vmem [#allocation5], %s142
          %s144 = smul.u32 4, %s17
          %146 = vsyncadd %s140, 0
          %s147 = smul.addr %s144, 8
          %s148 = scalar_lea.hbm %s1, %s147
          %s149 = sshll.u32 %s148, 4
          %s150 = int_to_ptr.hbm [resolvable:$true] %s149
          %s151 = sshll.u32 %s143, 4
          %s152 = int_to_ptr.vmem [resolvable:$true] %s151
          %157 = dma.hbm_to_vmem [thread:$0]  %s150, 512, %s152, %s140, 128, 128, 8
        $region24: #{tpu_custom_call.1} parent=15 // pred_fallthru
          _
      $region16: #{tpu_custom_call.1} parent=5 // pred_fallthru
        _
      %p158 = scmp.le.s32.totalorder 1, %s17
      %p159 = scmp.lt.s32.totalorder %s17, 5
      %p160 = pnand %p158, %p159
      %p161 = pneg %p160
      // Predicated region
      $region25: #{tpu_custom_call.1} parent=5 // pred_check
        _
      $region26: #{tpu_custom_call.1} parent=5 // pred_check_branch
        %163 = sbr.rel (%p160) target = $region28
      $region27: #{tpu_custom_call.1} parent=5 // pred_region
        %s164 = ssub.s32 %s17, 1
        %s165 = sand.u32 %s30, 1
        %s166 = scalar_lea.sflag [#allocation3], %s165
        %s167 = sand.u32 %s30, 1
        %s168 = smul.addr %s167, 32
        %s169 = scalar_lea.vmem [#allocation2], %s168
        // Predicated region
        $region29: #{tpu_custom_call.1} parent=27 // pred_check
          %p170 = pneg %p43
        $region30: #{tpu_custom_call.1} parent=27 // pred_check_branch
          %172 = sbr.rel (%p170) target = $region32
        $region31: #{tpu_custom_call.1} parent=27 // pred_region
          %174 = dma.done %s166, 512
        $region32: #{tpu_custom_call.1} parent=27 // pred_fallthru
          _
        %s175 = sand.u32 %s56, 1
        %s176 = scalar_lea.sflag [#allocation6], %s175
        %s177 = sand.u32 %s56, 1
        %s178 = smul.addr %s177, 32
        %s179 = scalar_lea.vmem [#allocation5], %s178
        // Predicated region
        $region33: #{tpu_custom_call.1} parent=27 // pred_check
          %p180 = pneg %p69
        $region34: #{tpu_custom_call.1} parent=27 // pred_check_branch
          %182 = sbr.rel (%p180) target = $region36
        $region35: #{tpu_custom_call.1} parent=27 // pred_region
          %184 = dma.done %s176, 512
        $region36: #{tpu_custom_call.1} parent=27 // pred_fallthru
          _
        %s185 = sand.u32 %s30, 1
        %s186 = scalar_lea.sflag [#allocation3], %s185
        %s187 = sand.u32 %s30, 1
        %s188 = smul.addr %s187, 32
        %s189 = scalar_lea.vmem [#allocation2], %s188
        %p190 = pneg %p43
        %p191 = pneg %p40
        %s192 = sand.u32 %s56, 1
        %s193 = scalar_lea.sflag [#allocation6], %s192
        %s194 = sand.u32 %s56, 1
        %s195 = smul.addr %s194, 32
        %s196 = scalar_lea.vmem [#allocation5], %s195
        %p197 = pneg %p69
        %p198 = pneg %p66
        %p199 = pneg %p95
        %p200 = pneg %p92
        %s201 = sand.u32 %s82, 1
        %s202 = scalar_lea.sflag [#allocation4], %s201
        %s203 = sand.u32 %s82, 1
        %s204 = smul.addr %s203, 32
        %s205 = scalar_lea.vmem [#allocation7], %s204
        %s206 = smul.u32 4, %s22
        %s207 = smul.u32 4, %s22
        %s208 = smul.u32 4, %s22
        %v209 = vld [vmem:[%s169] sm:$0xff]
        %v210 = vld [vmem:[%s169 + $0x8] sm:$0xff]
        %v211 = vld [vmem:[%s169 + $0x10] sm:$0xff]
        %v212 = vld [vmem:[%s169 + $0x18] sm:$0xff]
        %v213 = vld [vmem:[%s179] sm:$0xff]
        %v214 = vld [vmem:[%s179 + $0x8] sm:$0xff]
        %v215 = vld [vmem:[%s179 + $0x10] sm:$0xff]
        %v216 = vld [vmem:[%s179 + $0x18] sm:$0xff]
        %v217 = vmul.f32 %v209, 0.5
        %v218 = vmul.f32 %v210, 0.5
        %v219 = vmul.f32 %v211, 0.5
        %v220 = vmul.f32 %v212, 0.5
        %225 = vrot.lane.b32.xlu0 %v217, 126
        %v226 = vpop.permute.xlu0 %225
        %227 = vrot.lane.b32.xlu0 %v218, 126
        %v228 = vpop.permute.xlu0 %227
        %229 = vrot.lane.b32.xlu0 %v219, 126
        %v230 = vpop.permute.xlu0 %229
        %231 = vrot.lane.b32.xlu0 %v220, 126
        %v232 = vpop.permute.xlu0 %231
        %v237 = vsub.f32 %v209, %v226
        %v238 = vsub.f32 %v210, %v228
        %v239 = vsub.f32 %v211, %v230
        %v240 = vsub.f32 %v212, %v232
        %v241 = vadd.f32 %v209, %v226
        %v242 = vadd.f32 %v210, %v228
        %v243 = vadd.f32 %v211, %v230
        %v244 = vadd.f32 %v212, %v232
        %v245 = vmul.f32 %v213, 0.5
        %v246 = vmul.f32 %v214, 0.5
        %v247 = vmul.f32 %v215, 0.5
        %v248 = vmul.f32 %v216, 0.5
        %vm249 = vcmp.lt.f32.partialorder %v245, 0.0
        %vm250 = vcmp.lt.f32.partialorder %v246, 0.0
        %vm251 = vcmp.lt.f32.partialorder %v247, 0.0
        %vm252 = vcmp.lt.f32.partialorder %v248, 0.0
        %v253 = vceil.f32 %v245
        %v254 = vceil.f32 %v246
        %v255 = vceil.f32 %v247
        %v256 = vceil.f32 %v248
        %v257 = vfloor.f32 %v245
        %v258 = vfloor.f32 %v246
        %v259 = vfloor.f32 %v247
        %v260 = vfloor.f32 %v248
        %v261 = vsel %vm249, %v253, %v257
        %v262 = vsel %vm250, %v254, %v258
        %v263 = vsel %vm251, %v255, %v259
        %v264 = vsel %vm252, %v256, %v260
        %269 = vrot.lane.b32.xlu0 %v261, 126
        %v270 = vpop.permute.xlu0 %269
        %271 = vrot.lane.b32.xlu0 %v262, 126
        %v272 = vpop.permute.xlu0 %271
        %273 = vrot.lane.b32.xlu0 %v263, 126
        %v274 = vpop.permute.xlu0 %273
        %275 = vrot.lane.b32.xlu0 %v264, 126
        %v276 = vpop.permute.xlu0 %275
        %v281 = vsub.f32 %v213, %v270
        %v282 = vsub.f32 %v214, %v272
        %v283 = vsub.f32 %v215, %v274
        %v284 = vsub.f32 %v216, %v276
        %289 = vrot.lane.b32.xlu0 %v213, 126
        %v290 = vpop.permute.xlu0 %289
        %291 = vrot.lane.b32.xlu0 %v214, 126
        %v292 = vpop.permute.xlu0 %291
        %293 = vrot.lane.b32.xlu0 %v215, 126
        %v294 = vpop.permute.xlu0 %293
        %295 = vrot.lane.b32.xlu0 %v216, 126
        %v296 = vpop.permute.xlu0 %295
        %v301 = vadd.f32 %v281, %v290
        %v302 = vadd.f32 %v282, %v292
        %v303 = vadd.f32 %v283, %v294
        %v304 = vadd.f32 %v284, %v296
        %v305 = vmax.f32 %v237, %v281
        %v306 = vmax.f32 %v238, %v282
        %v307 = vmax.f32 %v239, %v283
        %v308 = vmax.f32 %v240, %v284
        %v309 = vmin.f32 %v241, %v301
        %v310 = vmin.f32 %v242, %v302
        %v311 = vmin.f32 %v243, %v303
        %v312 = vmin.f32 %v244, %v304
        %v313 = vsub.f32 %v309, %v305
        %v314 = vsub.f32 %v310, %v306
        %v315 = vsub.f32 %v311, %v307
        %v316 = vsub.f32 %v312, %v308
        %vm317 = vcmp.gt.f32.partialorder %v313, 0.0
        %vm318 = vcmp.gt.f32.partialorder %v314, 0.0
        %vm319 = vcmp.gt.f32.partialorder %v315, 0.0
        %vm320 = vcmp.gt.f32.partialorder %v316, 0.0
        %v321 = vsel %vm317, 1, 0
        %v322 = vsel %vm318, 1, 0
        %v323 = vsel %vm319, 1, 0
        %v324 = vsel %vm320, 1, 0
        %325 = vrot.lane.b32.xlu0 %v321, 127
        %v326 = vpop.permute.xlu0 %325
        %327 = vrot.lane.b32.xlu0 %v322, 127
        %v328 = vpop.permute.xlu0 %327
        %329 = vrot.lane.b32.xlu0 %v323, 127
        %v330 = vpop.permute.xlu0 %329
        %331 = vrot.lane.b32.xlu0 %v324, 127
        %v332 = vpop.permute.xlu0 %331
        %vm333 = vcmp.ne.s32.totalorder %v326, 0
        %vm334 = vcmp.ne.s32.totalorder %v328, 0
        %vm335 = vcmp.ne.s32.totalorder %v330, 0
        %vm336 = vcmp.ne.s32.totalorder %v332, 0
        %vm337 = vmand %vm317, %vm333
        %vm338 = vmand %vm318, %vm334
        %vm339 = vmand %vm319, %vm335
        %vm340 = vmand %vm320, %vm336
        %345 = vrot.lane.b32.xlu0 %v313, 127
        %v346 = vpop.permute.xlu0 %345
        %347 = vrot.lane.b32.xlu0 %v314, 127
        %v348 = vpop.permute.xlu0 %347
        %349 = vrot.lane.b32.xlu0 %v315, 127
        %v350 = vpop.permute.xlu0 %349
        %351 = vrot.lane.b32.xlu0 %v316, 127
        %v352 = vpop.permute.xlu0 %351
        %v357 = vmul.f32 %v313, %v346
        %v358 = vmul.f32 %v314, %v348
        %v359 = vmul.f32 %v315, %v350
        %v360 = vmul.f32 %v316, %v352
        %v361 = vsel %vm337, %v357, 0.0
        %v362 = vsel %vm338, %v358, 0.0
        %v363 = vsel %vm339, %v359, 0.0
        %v364 = vsel %vm340, %v360, 0.0
        %369 = vrot.lane.b32.xlu0 %v209, 127
        %v370 = vpop.permute.xlu0 %369
        %371 = vrot.lane.b32.xlu0 %v210, 127
        %v372 = vpop.permute.xlu0 %371
        %373 = vrot.lane.b32.xlu0 %v211, 127
        %v374 = vpop.permute.xlu0 %373
        %375 = vrot.lane.b32.xlu0 %v212, 127
        %v376 = vpop.permute.xlu0 %375
        %v381 = vmul.f32 %v209, %v370
        %v382 = vmul.f32 %v210, %v372
        %v383 = vmul.f32 %v211, %v374
        %v384 = vmul.f32 %v212, %v376
        %385 = vrot.lane.b32.xlu0 %v213, 127
        %v386 = vpop.permute.xlu0 %385
        %387 = vrot.lane.b32.xlu0 %v214, 127
        %v388 = vpop.permute.xlu0 %387
        %389 = vrot.lane.b32.xlu0 %v215, 127
        %v390 = vpop.permute.xlu0 %389
        %391 = vrot.lane.b32.xlu0 %v216, 127
        %v392 = vpop.permute.xlu0 %391
        %v397 = vmul.f32 %v213, %v386
        %v398 = vmul.f32 %v214, %v388
        %v399 = vmul.f32 %v215, %v390
        %v400 = vmul.f32 %v216, %v392
        %v401 = vadd.f32 %v381, %v397
        %v402 = vadd.f32 %v382, %v398
        %v403 = vadd.f32 %v383, %v399
        %v404 = vadd.f32 %v384, %v400
        %409 = vrot.lane.b32.xlu0 %v361, 2
        %v410 = vpop.permute.xlu0 %409
        %411 = vrot.lane.b32.xlu0 %v362, 2
        %v412 = vpop.permute.xlu0 %411
        %413 = vrot.lane.b32.xlu0 %v363, 2
        %v414 = vpop.permute.xlu0 %413
        %415 = vrot.lane.b32.xlu0 %v364, 2
        %v416 = vpop.permute.xlu0 %415
        %v421 = vsub.f32 %v401, %v410
        %v422 = vsub.f32 %v402, %v412
        %v423 = vsub.f32 %v403, %v414
        %v424 = vsub.f32 %v404, %v416
        %v425 = vadd.f32 %v421, 1e-16
        %v426 = vadd.f32 %v422, 1e-16
        %v427 = vadd.f32 %v423, 1e-16
        %v428 = vadd.f32 %v424, 1e-16
        %v429 = vrcp.pop %v425
        %v430 = vmul.f32 %v425, %v429
        %v431 = vsub.f32 1.0, %v430
        %v432 = vmul.f32 %v429, %v431
        %v433 = vadd.f32 %v429, %v432
        %vm434 = vweird.f32 %v425
        %vm435 = vweird.f32 %v429
        %vm436 = vmor %vm434, %vm435
        %v437 = vsel %vm436, %v429, %v433
        %v438 = vand.u32 2147483647, %v425
        %vm439 = vcmp.eq.f32.partialorder %v438, 8.507059e+37
        %v440 = vand.u32 %v425, 2147483648
        %v441 = vor.u32 1.1754944e-38, %v440
        %v442 = vsel %vm439, %v441, %v437
        %v443 = vrcp.pop %v426
        %v444 = vmul.f32 %v426, %v443
        %v445 = vsub.f32 1.0, %v444
        %v446 = vmul.f32 %v443, %v445
        %v447 = vadd.f32 %v443, %v446
        %vm448 = vweird.f32 %v426
        %vm449 = vweird.f32 %v443
        %vm450 = vmor %vm448, %vm449
        %v451 = vsel %vm450, %v443, %v447
        %v452 = vand.u32 2147483647, %v426
        %vm453 = vcmp.eq.f32.partialorder %v452, 8.507059e+37
        %v454 = vand.u32 %v426, 2147483648
        %v455 = vor.u32 1.1754944e-38, %v454
        %v456 = vsel %vm453, %v455, %v451
        %v457 = vrcp.pop %v427
        %v458 = vmul.f32 %v427, %v457
        %v459 = vsub.f32 1.0, %v458
        %v460 = vmul.f32 %v457, %v459
        %v461 = vadd.f32 %v457, %v460
        %vm462 = vweird.f32 %v427
        %vm463 = vweird.f32 %v457
        %vm464 = vmor %vm462, %vm463
        %v465 = vsel %vm464, %v457, %v461
        %v466 = vand.u32 2147483647, %v427
        %vm467 = vcmp.eq.f32.partialorder %v466, 8.507059e+37
        %v468 = vand.u32 %v427, 2147483648
        %v469 = vor.u32 1.1754944e-38, %v468
        %v470 = vsel %vm467, %v469, %v465
        %v471 = vrcp.pop %v428
        %v472 = vmul.f32 %v428, %v471
        %v473 = vsub.f32 1.0, %v472
        %v474 = vmul.f32 %v471, %v473
        %v475 = vadd.f32 %v471, %v474
        %vm476 = vweird.f32 %v428
        %vm477 = vweird.f32 %v471
        %vm478 = vmor %vm476, %vm477
        %v479 = vsel %vm478, %v471, %v475
        %v480 = vand.u32 2147483647, %v428
        %vm481 = vcmp.eq.f32.partialorder %v480, 8.507059e+37
        %v482 = vand.u32 %v428, 2147483648
        %v483 = vor.u32 1.1754944e-38, %v482
        %v484 = vsel %vm481, %v483, %v479
        %489 = vrot.lane.b32.xlu0 %v442, 126
        %v490 = vpop.permute.xlu0 %489
        %491 = vrot.lane.b32.xlu0 %v456, 126
        %v492 = vpop.permute.xlu0 %491
        %493 = vrot.lane.b32.xlu0 %v470, 126
        %v494 = vpop.permute.xlu0 %493
        %495 = vrot.lane.b32.xlu0 %v484, 126
        %v496 = vpop.permute.xlu0 %495
        %v501 = vmul.f32 %v361, %v490
        %v502 = vmul.f32 %v362, %v492
        %v503 = vmul.f32 %v363, %v494
        %v504 = vmul.f32 %v364, %v496
        %v505 = vmul.f32 %v501, %v501
        %v506 = vmul.f32 %v502, %v502
        %v507 = vmul.f32 %v503, %v503
        %v508 = vmul.f32 %v504, %v504
        %v509 = vsub.f32 1.0, %v505
        %v510 = vsub.f32 1.0, %v506
        %v511 = vsub.f32 1.0, %v507
        %v512 = vsub.f32 1.0, %v508
        %vm513 = vcmask 1022976
        %514 = vst.msk [vmem:[%s205] sm:$0xff] %vm513, %v509
        %515 = vst.msk [vmem:[%s205 + $0x8] sm:$0xff] %vm513, %v510
        %516 = vst.msk [vmem:[%s205 + $0x10] sm:$0xff] %vm513, %v511
        %517 = vst.msk [vmem:[%s205 + $0x18] sm:$0xff] %vm513, %v512
        %s518 = sand.u32 %s82, 1
        %s519 = scalar_lea.sflag [#allocation4], %s518
        %s520 = sand.u32 %s82, 1
        %s521 = smul.addr %s520, 32
        %s522 = scalar_lea.vmem [#allocation7], %s521
        // Predicated region
        $region37: #{tpu_custom_call.1} parent=27 // pred_check
          %p523 = pneg %p92
        $region38: #{tpu_custom_call.1} parent=27 // pred_check_branch
          %525 = sbr.rel (%p523) target = $region40
        $region39: #{tpu_custom_call.1} parent=27 // pred_region
          %s526 = smul.u32 4, %s22
          %528 = vsyncadd %s519, 0
          %s529 = smul.addr %s526, 8
          %s530 = scalar_lea.hbm %s2, %s529
          %s531 = sshll.u32 %s522, 4
          %s532 = int_to_ptr.vmem [resolvable:$true] %s531
          %s533 = sshll.u32 %s530, 4
          %s534 = int_to_ptr.hbm [resolvable:$true] %s533
          %539 = dma.vmem_to_hbm [thread:$0]  %s532, 512, %s534, %s519, 128, 128, 8
        $region40: #{tpu_custom_call.1} parent=27 // pred_fallthru
          _
      $region28: #{tpu_custom_call.1} parent=5 // pred_fallthru
        _
      %p540 = scmp.le.s32.totalorder 2, %s17
      // Predicated region
      $region41: #{tpu_custom_call.1} parent=5 // pred_check
        %p541 = pneg %p540
      $region42: #{tpu_custom_call.1} parent=5 // pred_check_branch
        %543 = sbr.rel (%p541) target = $region44
      $region43: #{tpu_custom_call.1} parent=5 // pred_region
        %s544 = ssub.s32 %s17, 2
        // Predicated region
        $region45: #{tpu_custom_call.1} parent=43 // pred_check
          %p545 = pneg %p98
        $region46: #{tpu_custom_call.1} parent=43 // pred_check_branch
          %547 = sbr.rel (%p545) target = $region48
        $region47: #{tpu_custom_call.1} parent=43 // pred_region
          %s548 = sand.u32 %s83, 1
          %s549 = scalar_lea.sflag [#allocation4], %s548
          %s550 = sand.u32 %s83, 1
          %s551 = smul.addr %s550, 32
          %s552 = scalar_lea.vmem [#allocation7], %s551
          %554 = dma.done %s549, 512
        $region48: #{tpu_custom_call.1} parent=43 // pred_fallthru
          _
      $region44: #{tpu_custom_call.1} parent=5 // pred_fallthru
        _
    $region6: #{tpu_custom_call.1} parent=1 // loop_footer
      %s21 = sadd.s32 1, %s17
    $region7: #{tpu_custom_call.1} parent=1 // loop_footer_branch
      %16 = sbr.rel target = $region3
    $region8: #{tpu_custom_call.1} parent=1 // loop_exit
      _
    %555 = vsyncpa [#allocation3], 1
    %s556 = scalar_lea.sflag [#allocation3], 1
    %557 = vsyncpa %s556, 1
    %558 = vsyncpa [#allocation6], 1
    %s559 = scalar_lea.sflag [#allocation6], 1
    %560 = vsyncpa %s559, 1
    %561 = vsyncpa [#allocation4], 1
    %s562 = scalar_lea.sflag [#allocation4], 1
    %563 = vsyncpa %s562, 1

</llo_original>
